<compile_context>
chip_gen: v5e
topology: v5e:2x2
jax: 0.10.0
libtpu: 0.0.40
codegen_flags: <defaults>
</compile_context>

<pallas_src>
import numpy as np
import jax
import jax.numpy as jnp
from jax.experimental import pallas as pl
from jax.experimental.pallas import tpu as pltpu


def make_positional_encoding(embed_dim: int, max_seq_len: int,
                             dtype=jnp.float32) -> jnp.ndarray:
    """Deterministic sin/cos positional-encoding table, matching the torch init.

    Built in f32 and cast ONCE to the model dtype here (module init), so the
    forward path never pays a per-call convert pass.
    """
    position = np.arange(0, max_seq_len, dtype=np.float32)[:, None]          # (L, 1)
    div_term = np.exp(
        np.arange(0, embed_dim, 2, dtype=np.float32)
        * -(np.log(10000.0) / embed_dim)
    )                                                                          # (ceil(D/2),)
    pe = np.zeros((max_seq_len, embed_dim), dtype=np.float32)
    pe[:, 0::2] = np.sin(position * div_term)
    pe[:, 1::2] = np.cos(position * div_term[: embed_dim // 2])               # odd-D safe
    return jnp.asarray(pe, dtype=dtype)


def _add_pe_kernel(x_ref, pe_ref, o_ref):
    # x_ref / o_ref: (TB, TS, D); pe_ref: (TS, D).
    # Leading-axis broadcast of pe across the batch tile is layout-free
    # (last two dims unchanged) and essentially free on the VPU.
    o_ref[...] = x_ref[...] + pe_ref[...]


def _choose_tiles(B: int, S: int, D: int, dtype,
                  *, target_step_bytes: int = 2 * 1024 * 1024,
                  vmem_budget: int = 12 * 1024 * 1024) -> tuple[int, int]:
    """Pick (batch_tile, seq_tile).

    vmem_budget = 12 MiB keeps the 6 resident tile buffers (double-buffered
    x, out, pe) inside the default scoped VMEM on every generation, v5e's
    16 MiB included; seq tiles are capped at 1024 rows (measured mem-bound-add
    sweeps show ~85% of HBM roofline at 512 rows, ~86% at 1024 — bigger tiles
    just burn VMEM, which matters most on v7x's 64 MiB).
    """
    dtype = jnp.dtype(dtype)
    item = dtype.itemsize
    sublane = {1: 32, 2: 16}.get(item, 8)          # dtype-aware sublane packing

    row_bytes = D * item
    # Max seq rows such that the 6-buffer footprint with batch_tile=1 fits.
    max_rows = max(sublane, vmem_budget // (6 * row_bytes))
    ts = min(S, 1024, max_rows)
    ts = max(sublane, (ts // sublane) * sublane)    # sublane-aligned

    # Prefer a seq tile that divides S exactly (no masked tail stores), but
    # only if it does not increase the number of grid steps.
    n_tiles = pl.cdiv(S, ts)
    for cand in range(ts, sublane - 1, -sublane):
        if pl.cdiv(S, cand) != n_tiles:
            break
        if S % cand == 0:
            ts = cand
            break

    # Batch tile: enlarge per-step DMAs toward ~target_step_bytes when the
    # seq tile alone is small, while staying inside the VMEM budget.
    tile_bytes = ts * row_bytes
    tb = max(1, min(B, target_step_bytes // max(tile_bytes, 1)))
    while tb > 1 and (4 * tb + 2) * tile_bytes > vmem_budget:
        tb -= 1
    while tb > 1 and B % tb != 0:                   # avoid a partial batch tail
        tb -= 1
    return tb, ts


def positional_encoding_forward(x: jnp.ndarray, pe: jnp.ndarray,
                                *, seq_tile: int | None = None,
                                batch_tile: int | None = None,
                                donate_x: bool = False) -> jnp.ndarray:
    """x: (B, S, D);  pe: (max_seq_len, D) in the model dtype.  Returns x + pe[:S, :]."""
    B, S, D = x.shape
    L, Dp = pe.shape
    assert Dp == D, f"pe feature dim {Dp} != x feature dim {D}"
    assert S <= L, f"seq_len {S} exceeds max_seq_len {L}"
    if pe.dtype != x.dtype:
        # Fallback only; prefer building the table in the model dtype once.
        # (Adding a pre-cast pe differs in the last bit from add-in-f32-then-
        # downcast; this matches the PyTorch module, whose parameter is stored
        # in the model dtype.)
        pe = pe.astype(x.dtype)

    tb_auto, ts_auto = _choose_tiles(B, S, D, x.dtype)
    ts = seq_tile if seq_tile is not None else ts_auto
    tb = batch_tile if batch_tile is not None else tb_auto

    grid = (pl.cdiv(S, ts), pl.cdiv(B, tb))         # batch innermost -> pe tile reused

    item = jnp.dtype(x.dtype).itemsize
    footprint = (4 * tb + 2) * ts * D * item        # 2x x + 2x out + 2x pe buffers
    vmem_limit = int(footprint) + 2 * 1024 * 1024   # explicit, always-legal limit

    extra = {}
    if donate_x:
        # Only safe if the caller never reuses x and the surrounding jax.jit
        # actually donates the buffer (donate_argnums), else XLA inserts a copy.
        extra["input_output_aliases"] = {0: 0}

    return pl.pallas_call(
        _add_pe_kernel,
        out_shape=jax.ShapeDtypeStruct((B, S, D), x.dtype),
        grid=grid,
        in_specs=[
            pl.BlockSpec((tb, ts, D), lambda s, b: (b, s, 0)),   # x
            pl.BlockSpec((ts, D), lambda s, b: (s, 0)),          # pe (full table), invariant in b
        ],
        out_specs=pl.BlockSpec((tb, ts, D), lambda s, b: (b, s, 0)),
        compiler_params=pltpu.CompilerParams(
            dimension_semantics=("parallel", "arbitrary"),
            vmem_limit_bytes=vmem_limit,
        ),
        **extra,
    )(x, pe)


if __name__ == "__main__":
    # Module constants from the spec; small batch/seq for the test.
    embed_dim, max_seq_len = 512, 700
    batch, seq_len = 2, 40

    key = jax.random.PRNGKey(0)
    x = jax.random.normal(key, (batch, seq_len, embed_dim), dtype=jnp.float32)
    pe = make_positional_encoding(embed_dim, max_seq_len, dtype=x.dtype)

    ref = x + pe[:seq_len, :]

    # 1) Auto-tiled path: batch-tiled single grid step at these small shapes.
    out = jax.block_until_ready(positional_encoding_forward(x, pe))
    np.testing.assert_allclose(np.asarray(out), np.asarray(ref), rtol=1e-6, atol=1e-6)

    # 2) Forced small tiles: exercises the multi-tile seq axis (incl. a partial
    #    tail tile) and pe-tile reuse across the inner batch loop.
    out2 = jax.block_until_ready(
        positional_encoding_forward(x, pe, seq_tile=16, batch_tile=1))
    np.testing.assert_allclose(np.asarray(out2), np.asarray(ref), rtol=1e-6, atol=1e-6)

    print("KERNEL_OK")
</pallas_src>

<mosaic_0001>
module attributes {stable_mosaic.version = 11 : i64} {
  func.func @_add_pe_kernel(%arg0: i32, %arg1: i32, %arg2: memref<2x40x512xf32, #tpu.memory_space<vmem>>, %arg3: memref<40x512xf32, #tpu.memory_space<vmem>>, %arg4: memref<2x40x512xf32, #tpu.memory_space<vmem>>) attributes {dimension_semantics = [#tpu.dimension_semantics<parallel>, #tpu.dimension_semantics<arbitrary>], iteration_bounds = array<i64: 1, 1>, scalar_prefetch = 0 : i64, scratch_operands = 0 : i64, tpu.core_type = #tpu.core_type<tc>, window_params = [{transform_indices = @transform_0, window_bounds = array<i64: 2, 40, 512>}, {transform_indices = @transform_1, window_bounds = array<i64: 40, 512>}, {transform_indices = @transform_2, window_bounds = array<i64: 2, 40, 512>}]} {
    %c0 = arith.constant 0 : index
    %c0_0 = arith.constant 0 : index
    %c0_1 = arith.constant 0 : index
    %0 = vector.load %arg2[%c0, %c0_0, %c0_1] : memref<2x40x512xf32, #tpu.memory_space<vmem>>, vector<2x40x512xf32>
    %c0_2 = arith.constant 0 : index
    %c0_3 = arith.constant 0 : index
    %1 = vector.load %arg3[%c0_2, %c0_3] : memref<40x512xf32, #tpu.memory_space<vmem>>, vector<40x512xf32>
    %2 = vector.shape_cast %1 : vector<40x512xf32> to vector<1x40x512xf32>
    %3 = vector.broadcast %2 : vector<1x40x512xf32> to vector<2x40x512xf32>
    %4 = arith.addf %0, %3 : vector<2x40x512xf32>
    %c0_4 = arith.constant 0 : index
    %c0_5 = arith.constant 0 : index
    %c0_6 = arith.constant 0 : index
    %5 = vector.load %arg4[%c0_4, %c0_5, %c0_6] : memref<2x40x512xf32, #tpu.memory_space<vmem>>, vector<2x40x512xf32>
    tpu.vector_store %arg4[%c0_4, %c0_5, %c0_6], %4 {strides = array<i32>} : memref<2x40x512xf32, #tpu.memory_space<vmem>>, vector<2x40x512xf32>,
    return
  }
  func.func @transform_0(%arg0: i32, %arg1: i32) -> (i32, i32, i32) {
    %c0_i32 = arith.constant 0 : i32
    %c0_i32_0 = arith.constant 0 : i32
    return %arg1, %arg0, %c0_i32 : i32, i32, i32
  }
  func.func @transform_1(%arg0: i32, %arg1: i32) -> (i32, i32) {
    %c0_i32 = arith.constant 0 : i32
    %c0_i32_0 = arith.constant 0 : i32
    return %arg0, %c0_i32 : i32, i32
  }
  func.func @transform_2(%arg0: i32, %arg1: i32) -> (i32, i32, i32) {
    %c0_i32 = arith.constant 0 : i32
    %c0_i32_0 = arith.constant 0 : i32
    return %arg1, %arg0, %c0_i32 : i32, i32, i32
  }
}

</mosaic_0001>

<llo_original>
// kernel: tpu_custom_call.1
$region0: #{tpu_custom_call.1}
  #allocation0 [shape = 'u32[]', space=smem, size = 0x4, offset = 0x4, fixed_abs, tag = 'smem constant byte address 0x4 - core index']
  #allocation1 [shape = 'u32[72,128]{1,0:T(1,128)}', space=vmem, size = 0x9000, scoped, tag = 'internal scratch']
  %s0 = inlined_call_operand.hbm [shape: f32[2,40,512], index: 0, kind: input, shape index: {}]
  %s1 = inlined_call_operand.hbm [shape: f32[700,512], index: 1, kind: input, shape index: {}]
  %s2 = inlined_call_operand.hbm [shape: f32[2,40,512], index: 2, kind: output, shape index: {}]
  %s3 = sld [smem:[#allocation0]]
  $region26: #{tpu_custom_call.1} parent=0
    _
  %s5 = ssub.s32 1, %s3
  %s6 = scalar_select 0, %s5, %s3
  $region1: #{tpu_custom_call.1} parent=0
    #allocation2 [shape = 'u8[163840]{0}', space=vmem, size = 0x28000, scoped, tag = 'input window, operand 0, single buffered']
    #allocation3 [shape = 's32[1]{0}', space=sflag, size = 0x4, scoped, tag = 'scoped memory for tpu_custom_call.1']
    #allocation4 [shape = 's32[1]{0}', space=sflag, size = 0x4, scoped, tag = 'scoped memory for tpu_custom_call.1']
    #allocation5 [shape = 'u8[81920]{0}', space=vmem, size = 0x14000, scoped, tag = 'input window, operand 1, single buffered']
    #allocation6 [shape = 's32[1]{0}', space=sflag, size = 0x4, scoped, tag = 'scoped memory for tpu_custom_call.1']
    #allocation7 [shape = 'u8[163840]{0}', space=vmem, size = 0x28000, scoped, tag = 'output window, operand 0, single buffered']
    %7 = vsyncpa [#allocation3], 0
    %8 = vsyncpa [#allocation6], 0
    %9 = vsyncpa [#allocation4], 0
    // Predicated region
    $region2: #{tpu_custom_call.1} parent=1 // pred_check
      _
    $region3: #{tpu_custom_call.1} parent=1 // pred_check_branch
      %11 = sbr.rel (0) target = $region5
    $region4: #{tpu_custom_call.1} parent=1 // pred_region
      %13 = vsyncadd [#allocation3], 0
      %s14 = sshll.u32 %s0, 4
      %s15 = int_to_ptr.hbm [resolvable:$true] %s14
      %s16 = sshll.u32 [#allocation2], 4
      %s17 = int_to_ptr.vmem [resolvable:$true] %s16
      %22 = dma.hbm_to_vmem [thread:$0]  %s15, 5120, %s17, [#allocation3], 512, 512, 32
    $region5: #{tpu_custom_call.1} parent=1 // pred_fallthru
      _
    // Predicated region
    $region6: #{tpu_custom_call.1} parent=1 // pred_check
      _
    $region7: #{tpu_custom_call.1} parent=1 // pred_check_branch
      %24 = sbr.rel (0) target = $region9
    $region8: #{tpu_custom_call.1} parent=1 // pred_region
      %26 = vsyncadd [#allocation6], 0
      %s27 = sshll.u32 %s1, 4
      %s28 = int_to_ptr.hbm [resolvable:$true] %s27
      %s29 = sshll.u32 [#allocation5], 4
      %s30 = int_to_ptr.vmem [resolvable:$true] %s29
      %35 = dma.hbm_to_vmem [thread:$0]  %s28, 2560, %s30, [#allocation6], 512, 512, 32
    $region9: #{tpu_custom_call.1} parent=1 // pred_fallthru
      _
    // Predicated region
    $region10: #{tpu_custom_call.1} parent=1 // pred_check
      _
    $region11: #{tpu_custom_call.1} parent=1 // pred_check_branch
      %37 = sbr.rel (0) target = $region13
    $region12: #{tpu_custom_call.1} parent=1 // pred_region
      %39 = dma.done [#allocation3], 5120
    $region13: #{tpu_custom_call.1} parent=1 // pred_fallthru
      _
    // Predicated region
    $region14: #{tpu_custom_call.1} parent=1 // pred_check
      _
    $region15: #{tpu_custom_call.1} parent=1 // pred_check_branch
      %41 = sbr.rel (0) target = $region17
    $region16: #{tpu_custom_call.1} parent=1 // pred_region
      %43 = dma.done [#allocation6], 2560
    $region17: #{tpu_custom_call.1} parent=1 // pred_fallthru
      _
    %v44 = vld [vmem:[#allocation2] sm:$0xff]
    %v45 = vld [vmem:[#allocation2 + $0x8] sm:$0xff]
    %v46 = vld [vmem:[#allocation2 + $0x10] sm:$0xff]
    %v47 = vld [vmem:[#allocation2 + $0x18] sm:$0xff]
    %v48 = vld [vmem:[#allocation2 + $0x20] sm:$0xff]
    %v49 = vld [vmem:[#allocation2 + $0x28] sm:$0xff]
    %v50 = vld [vmem:[#allocation2 + $0x30] sm:$0xff]
    %v51 = vld [vmem:[#allocation2 + $0x38] sm:$0xff]
    %v52 = vld [vmem:[#allocation2 + $0x40] sm:$0xff]
    %v53 = vld [vmem:[#allocation2 + $0x48] sm:$0xff]
    %v54 = vld [vmem:[#allocation2 + $0x50] sm:$0xff]
    %v55 = vld [vmem:[#allocation2 + $0x58] sm:$0xff]
    %v56 = vld [vmem:[#allocation2 + $0x60] sm:$0xff]
    %v57 = vld [vmem:[#allocation2 + $0x68] sm:$0xff]
    %v58 = vld [vmem:[#allocation2 + $0x70] sm:$0xff]
    %v59 = vld [vmem:[#allocation2 + $0x78] sm:$0xff]
    %v60 = vld [vmem:[#allocation2 + $0x80] sm:$0xff]
    %v61 = vld [vmem:[#allocation2 + $0x88] sm:$0xff]
    %v62 = vld [vmem:[#allocation2 + $0x90] sm:$0xff]
    %v63 = vld [vmem:[#allocation2 + $0x98] sm:$0xff]
    %v64 = vld [vmem:[#allocation2 + $0xa0] sm:$0xff]
    %v65 = vld [vmem:[#allocation2 + $0xa8] sm:$0xff]
    %v66 = vld [vmem:[#allocation2 + $0xb0] sm:$0xff]
    %v67 = vld [vmem:[#allocation2 + $0xb8] sm:$0xff]
    %v68 = vld [vmem:[#allocation2 + $0xc0] sm:$0xff]
    %v69 = vld [vmem:[#allocation2 + $0xc8] sm:$0xff]
    %v70 = vld [vmem:[#allocation2 + $0xd0] sm:$0xff]
    %v71 = vld [vmem:[#allocation2 + $0xd8] sm:$0xff]
    %v72 = vld [vmem:[#allocation2 + $0xe0] sm:$0xff]
    %v73 = vld [vmem:[#allocation2 + $0xe8] sm:$0xff]
    %v74 = vld [vmem:[#allocation2 + $0xf0] sm:$0xff]
    %v75 = vld [vmem:[#allocation2 + $0xf8] sm:$0xff]
    %v76 = vld [vmem:[#allocation2 + $0x100] sm:$0xff]
    %v77 = vld [vmem:[#allocation2 + $0x108] sm:$0xff]
    %v78 = vld [vmem:[#allocation2 + $0x110] sm:$0xff]
    %v79 = vld [vmem:[#allocation2 + $0x118] sm:$0xff]
    %v80 = vld [vmem:[#allocation2 + $0x120] sm:$0xff]
    %v81 = vld [vmem:[#allocation2 + $0x128] sm:$0xff]
    %v82 = vld [vmem:[#allocation2 + $0x130] sm:$0xff]
    %v83 = vld [vmem:[#allocation2 + $0x138] sm:$0xff]
    %v84 = vld [vmem:[#allocation5] sm:$0xff]
    %v85 = vld [vmem:[#allocation5 + $0x8] sm:$0xff]
    %v86 = vld [vmem:[#allocation5 + $0x10] sm:$0xff]
    %v87 = vld [vmem:[#allocation5 + $0x18] sm:$0xff]
    %v88 = vld [vmem:[#allocation5 + $0x20] sm:$0xff]
    %v89 = vld [vmem:[#allocation5 + $0x28] sm:$0xff]
    %v90 = vld [vmem:[#allocation5 + $0x30] sm:$0xff]
    %v91 = vld [vmem:[#allocation5 + $0x38] sm:$0xff]
    %v92 = vld [vmem:[#allocation5 + $0x40] sm:$0xff]
    %v93 = vld [vmem:[#allocation5 + $0x48] sm:$0xff]
    %v94 = vld [vmem:[#allocation5 + $0x50] sm:$0xff]
    %v95 = vld [vmem:[#allocation5 + $0x58] sm:$0xff]
    %v96 = vld [vmem:[#allocation5 + $0x60] sm:$0xff]
    %v97 = vld [vmem:[#allocation5 + $0x68] sm:$0xff]
    %v98 = vld [vmem:[#allocation5 + $0x70] sm:$0xff]
    %v99 = vld [vmem:[#allocation5 + $0x78] sm:$0xff]
    %v100 = vld [vmem:[#allocation5 + $0x80] sm:$0xff]
    %v101 = vld [vmem:[#allocation5 + $0x88] sm:$0xff]
    %v102 = vld [vmem:[#allocation5 + $0x90] sm:$0xff]
    %v103 = vld [vmem:[#allocation5 + $0x98] sm:$0xff]
    %v104 = vadd.f32 %v44, %v84
    %v105 = vadd.f32 %v45, %v85
    %v106 = vadd.f32 %v46, %v86
    %v107 = vadd.f32 %v47, %v87
    %v108 = vadd.f32 %v48, %v88
    %v109 = vadd.f32 %v49, %v89
    %v110 = vadd.f32 %v50, %v90
    %v111 = vadd.f32 %v51, %v91
    %v112 = vadd.f32 %v52, %v92
    %v113 = vadd.f32 %v53, %v93
    %v114 = vadd.f32 %v54, %v94
    %v115 = vadd.f32 %v55, %v95
    %v116 = vadd.f32 %v56, %v96
    %v117 = vadd.f32 %v57, %v97
    %v118 = vadd.f32 %v58, %v98
    %v119 = vadd.f32 %v59, %v99
    %v120 = vadd.f32 %v60, %v100
    %v121 = vadd.f32 %v61, %v101
    %v122 = vadd.f32 %v62, %v102
    %v123 = vadd.f32 %v63, %v103
    %v124 = vadd.f32 %v64, %v84
    %v125 = vadd.f32 %v65, %v85
    %v126 = vadd.f32 %v66, %v86
    %v127 = vadd.f32 %v67, %v87
    %v128 = vadd.f32 %v68, %v88
    %v129 = vadd.f32 %v69, %v89
    %v130 = vadd.f32 %v70, %v90
    %v131 = vadd.f32 %v71, %v91
    %v132 = vadd.f32 %v72, %v92
    %v133 = vadd.f32 %v73, %v93
    %v134 = vadd.f32 %v74, %v94
    %v135 = vadd.f32 %v75, %v95
    %v136 = vadd.f32 %v76, %v96
    %v137 = vadd.f32 %v77, %v97
    %v138 = vadd.f32 %v78, %v98
    %v139 = vadd.f32 %v79, %v99
    %v140 = vadd.f32 %v80, %v100
    %v141 = vadd.f32 %v81, %v101
    %v142 = vadd.f32 %v82, %v102
    %v143 = vadd.f32 %v83, %v103
    %144 = vst [vmem:[#allocation7] sm:$0xff] %v104
    %145 = vst [vmem:[#allocation7 + $0x8] sm:$0xff] %v105
    %146 = vst [vmem:[#allocation7 + $0x10] sm:$0xff] %v106
    %147 = vst [vmem:[#allocation7 + $0x18] sm:$0xff] %v107
    %148 = vst [vmem:[#allocation7 + $0x20] sm:$0xff] %v108
    %149 = vst [vmem:[#allocation7 + $0x28] sm:$0xff] %v109
    %150 = vst [vmem:[#allocation7 + $0x30] sm:$0xff] %v110
    %151 = vst [vmem:[#allocation7 + $0x38] sm:$0xff] %v111
    %152 = vst [vmem:[#allocation7 + $0x40] sm:$0xff] %v112
    %153 = vst [vmem:[#allocation7 + $0x48] sm:$0xff] %v113
    %154 = vst [vmem:[#allocation7 + $0x50] sm:$0xff] %v114
    %155 = vst [vmem:[#allocation7 + $0x58] sm:$0xff] %v115
    %156 = vst [vmem:[#allocation7 + $0x60] sm:$0xff] %v116
    %157 = vst [vmem:[#allocation7 + $0x68] sm:$0xff] %v117
    %158 = vst [vmem:[#allocation7 + $0x70] sm:$0xff] %v118
    %159 = vst [vmem:[#allocation7 + $0x78] sm:$0xff] %v119
    %160 = vst [vmem:[#allocation7 + $0x80] sm:$0xff] %v120
    %161 = vst [vmem:[#allocation7 + $0x88] sm:$0xff] %v121
    %162 = vst [vmem:[#allocation7 + $0x90] sm:$0xff] %v122
    %163 = vst [vmem:[#allocation7 + $0x98] sm:$0xff] %v123
    %164 = vst [vmem:[#allocation7 + $0xa0] sm:$0xff] %v124
    %165 = vst [vmem:[#allocation7 + $0xa8] sm:$0xff] %v125
    %166 = vst [vmem:[#allocation7 + $0xb0] sm:$0xff] %v126
    %167 = vst [vmem:[#allocation7 + $0xb8] sm:$0xff] %v127
    %168 = vst [vmem:[#allocation7 + $0xc0] sm:$0xff] %v128
    %169 = vst [vmem:[#allocation7 + $0xc8] sm:$0xff] %v129
    %170 = vst [vmem:[#allocation7 + $0xd0] sm:$0xff] %v130
    %171 = vst [vmem:[#allocation7 + $0xd8] sm:$0xff] %v131
    %172 = vst [vmem:[#allocation7 + $0xe0] sm:$0xff] %v132
    %173 = vst [vmem:[#allocation7 + $0xe8] sm:$0xff] %v133
    %174 = vst [vmem:[#allocation7 + $0xf0] sm:$0xff] %v134
    %175 = vst [vmem:[#allocation7 + $0xf8] sm:$0xff] %v135
    %176 = vst [vmem:[#allocation7 + $0x100] sm:$0xff] %v136
    %177 = vst [vmem:[#allocation7 + $0x108] sm:$0xff] %v137
    %178 = vst [vmem:[#allocation7 + $0x110] sm:$0xff] %v138
    %179 = vst [vmem:[#allocation7 + $0x118] sm:$0xff] %v139
    %180 = vst [vmem:[#allocation7 + $0x120] sm:$0xff] %v140
    %181 = vst [vmem:[#allocation7 + $0x128] sm:$0xff] %v141
    %182 = vst [vmem:[#allocation7 + $0x130] sm:$0xff] %v142
    %183 = vst [vmem:[#allocation7 + $0x138] sm:$0xff] %v143
    // Predicated region
    $region18: #{tpu_custom_call.1} parent=1 // pred_check
      _
    $region19: #{tpu_custom_call.1} parent=1 // pred_check_branch
      %185 = sbr.rel (0) target = $region21
    $region20: #{tpu_custom_call.1} parent=1 // pred_region
      %187 = vsyncadd [#allocation4], 0
      %s188 = sshll.u32 [#allocation7], 4
      %s189 = int_to_ptr.vmem [resolvable:$true] %s188
      %s190 = sshll.u32 %s2, 4
      %s191 = int_to_ptr.hbm [resolvable:$true] %s190
      %196 = dma.vmem_to_hbm [thread:$0]  %s189, 5120, %s191, [#allocation4], 512, 512, 32
    $region21: #{tpu_custom_call.1} parent=1 // pred_fallthru
      _
    // Predicated region
    $region22: #{tpu_custom_call.1} parent=1 // pred_check
      _
    $region23: #{tpu_custom_call.1} parent=1 // pred_check_branch
      %198 = sbr.rel (0) target = $region25
    $region24: #{tpu_custom_call.1} parent=1 // pred_region
      %200 = dma.done [#allocation4], 5120
    $region25: #{tpu_custom_call.1} parent=1 // pred_fallthru
      _
    %201 = vsyncpa [#allocation3], 1
    %202 = vsyncpa [#allocation6], 1
    %203 = vsyncpa [#allocation4], 1

</llo_original>
